<compile_context>
chip_gen: v6e
topology: v6e:2x2x1
jax: 0.10.0
libtpu: 0.0.40
codegen_flags: <defaults>
</compile_context>

<pallas_src>
import functools

import jax
import jax.numpy as jnp
from jax import lax
from jax.experimental import pallas as pl
from jax.experimental.pallas import tpu as pltpu


def _downsample_kernel(x_ref, p_ref, w_ref, shift_ref, o_ref, *, vpu_conv_max_cin):
    # x_ref    : [1, Cin, TH2, 2W]  row pairs concatenated along the lane axis
    # p_ref    : [2W, W2]           constant 2x2 avg-pool block (entries 0 / 0.25)
    # w_ref    : [Cout, Cin]        1x1 conv weight with BN scale folded in (f32)
    # shift_ref: [Cout, 1]          folded BN shift (f32)
    # o_ref    : [1, Cout, TH2, W2]
    _, cin, th2, two_w = x_ref.shape
    _, cout, _, w2 = o_ref.shape

    xb = x_ref[0]                                          # [Cin, TH2, 2W], native dtype
    # Collapse (Cin, TH2) into the sublane axis; the lane axis (2W) is untouched, so this is a
    # tile-exact (free) shape cast whenever TH2 % 8 == 0 (guaranteed by the tile picker unless
    # TH2 equals the full extent).
    x2 = xb.reshape(cin * th2, two_w)                      # [Cin*TH2, 2W]

    # 2x2 average pool as one small MXU matmul against the constant [2W, W2] block
    # (exact 0 / 0.25 entries).  Native dtype in, f32 accumulation out.
    pooled = jnp.dot(x2, p_ref[...], preferred_element_type=jnp.float32)   # [Cin*TH2, W2] f32
    pooled = pooled.reshape(cin, th2, w2)                  # split sublanes back (lane dim unchanged)

    w = w_ref[...]                                         # [Cout, Cin] f32
    shift = shift_ref[...]                                 # [Cout, 1]  f32

    if cin <= vpu_conv_max_cin:
        # Tiny contraction: a K=Cin matmul wastes the MXU and pays push/pop latency -- unroll the
        # 1x1 conv as broadcast FMAs on the VPU.  Start from the BN shift (saves one full add).
        y = jnp.broadcast_to(shift[:, :, None], (cout, th2, w2))
        for ci in range(cin):
            y = y + w[:, ci][:, None, None] * pooled[ci]
        y = jnp.where(y >= 0.0, y, 0.1 * y)                # LeakyReLU(0.1)
        o_ref[0] = y.astype(o_ref.dtype)
    else:
        # Larger K: per-row-tile 2-D MXU matmuls (keeps every operand 2-D -- no lane-dim-changing
        # value reshapes).  TH2 is capped by the tile picker on this path to bound the unroll.
        for i in range(th2):
            yi = jnp.dot(w, pooled[:, i, :], preferred_element_type=jnp.float32) + shift
            yi = jnp.where(yi >= 0.0, yi, 0.1 * yi)        # LeakyReLU(0.1)
            o_ref[0, :, i, :] = yi.astype(o_ref.dtype)


def _vpu_conv_max_cin():
    """MXU-vs-VPU crossover for the 1x1 conv contraction size (bigger on 256-wide MXUs)."""
    try:
        kind = jax.devices()[0].device_kind.lower()
    except Exception:
        return 8
    if any(v in kind for v in ("v2", "v3", "v4", "v5")):
        return 8           # 128-wide MXU generations
    return 16              # v6e / v7x: small-K matmuls waste more of the 256-wide array


def _vmem_capacity_bytes():
    try:
        return int(pltpu.get_tpu_info().vmem_capacity_bytes)
    except Exception:
        return 128 * 1024 * 1024


def _vmem_estimate_bytes(t, cin, cout, W, W2, x_bytes, o_bytes):
    """Rough per-step VMEM: double-buffered in/out blocks + constants + in-kernel f32 temps."""
    in_blk = cin * t * 2 * W * x_bytes
    out_blk = cout * t * W2 * o_bytes
    temps = cin * t * 2 * W * 4 + 2 * cin * t * W2 * 4 + cout * t * W2 * 4
    consts = 2 * W * W2 * x_bytes + (cout * cin + cout) * 4
    return 2 * (in_blk + out_blk) + 2 * consts + temps


def _pick_row_tile(N, cin, cout, H2, W, W2, x_bytes, o_bytes, vmem_budget, conv_on_mxu,
                   max_in_block_bytes=8 * 1024 * 1024, mxu_unroll_cap=16):
    """TH2 = pooled rows per grid step.  BlockSpec legality: TH2 % 8 == 0 or TH2 == H2."""
    cands = [t for t in range(8, H2 + 1, 8) if H2 % t == 0]
    if H2 not in cands:
        cands.append(H2)                       # full-extent tile is always legal

    def fits(t):
        return (_vmem_estimate_bytes(t, cin, cout, W, W2, x_bytes, o_bytes) <= vmem_budget
                and cin * t * 2 * W * x_bytes <= max_in_block_bytes)

    fit = [t for t in cands if fits(t)]
    if conv_on_mxu:                            # bound the unrolled per-row matmul loop
        fit = [t for t in fit if t <= mxu_unroll_cap] or fit[:1]
    t = max(fit) if fit else min(cands)

    # v7x has 2 TensorCores: keep >= 2 grid steps whenever a legal smaller tile exists.
    if N * (H2 // t) < 2:
        smaller = [c for c in cands if H2 // c >= 2 and fits(c)]
        if smaller:
            t = max(smaller)
    return t


def efficient_downsample(x, conv_w, gamma, beta, running_mean, running_var, eps=1e-5):
    """x: NCHW; conv_w: [Cout, Cin, 1, 1]; BN params: [Cout].  Returns NCHW [N, Cout, H/2, W/2]."""
    N, Cin, H, W = x.shape
    Cout = conv_w.shape[0]
    assert H % 2 == 0 and W % 2 == 0, "AvgPool2d(2,2) path assumes even H, W"
    H2, W2 = H // 2, W // 2

    # ---- fold BatchNorm (inference) into the conv weight + a shift --------------------------
    scale = (gamma / jnp.sqrt(running_var + eps)).astype(jnp.float32)              # [Cout]
    wf = conv_w.reshape(Cout, Cin).astype(jnp.float32) * scale[:, None]            # [Cout, Cin]
    shift = (beta - running_mean * scale).astype(jnp.float32).reshape(Cout, 1)     # [Cout, 1]

    # ---- constant [2W, W2] pooling block (exact 0 / 0.25 entries, native dtype) -------------
    # Lane l of a row-pair block:  l < W -> even row, column l ;  l >= W -> odd row, column l-W.
    li = jnp.arange(2 * W)
    lo = jnp.arange(W2)
    pool_blk = jnp.where((li[:, None] % W) // 2 == lo[None, :], 0.25, 0.0).astype(x.dtype)

    # ---- free (row-major) reshape: each pooled row's two source rows share one lane row ------
    x4 = x.reshape(N, Cin, H2, 2 * W)

    # ---- tiling / VMEM budget (generation-aware) ---------------------------------------------
    vpu_max_cin = _vpu_conv_max_cin()
    conv_on_mxu = Cin > vpu_max_cin
    cap = _vmem_capacity_bytes()
    x_bytes = x.dtype.itemsize
    t = _pick_row_tile(N, Cin, Cout, H2, W, W2, x_bytes, x_bytes, cap // 2, conv_on_mxu)
    est = _vmem_estimate_bytes(t, Cin, Cout, W, W2, x_bytes, x_bytes)
    vmem_limit = int(min(int(0.9 * cap), max(32 * 1024 * 1024, 2 * est)))

    grid = (N, H2 // t)
    kernel = functools.partial(_downsample_kernel, vpu_conv_max_cin=vpu_max_cin)

    out = pl.pallas_call(
        kernel,
        out_shape=jax.ShapeDtypeStruct((N, Cout, H2, W2), x.dtype),
        grid_spec=pltpu.PrefetchScalarGridSpec(
            num_scalar_prefetch=0,
            grid=grid,
            in_specs=[
                pl.BlockSpec((1, Cin, t, 2 * W), lambda n, r: (n, 0, r, 0)),   # input row-pairs
                pl.BlockSpec((2 * W, W2), lambda n, r: (0, 0)),                # pool block (const)
                pl.BlockSpec((Cout, Cin), lambda n, r: (0, 0)),                # folded conv weight
                pl.BlockSpec((Cout, 1), lambda n, r: (0, 0)),                  # folded BN shift
            ],
            out_specs=pl.BlockSpec((1, Cout, t, W2), lambda n, r: (n, 0, r, 0)),
        ),
        compiler_params=pltpu.CompilerParams(
            dimension_semantics=("parallel", "parallel"),
            vmem_limit_bytes=vmem_limit),
    )(x4, pool_blk, wf, shift)

    return out                                             # already NCHW [N, Cout, H2, W2]


def _reference(x, conv_w, gamma, beta, running_mean, running_var, eps=1e-5):
    """Pure-JAX f32 reference mirroring the PyTorch forward (inference-mode BN)."""
    N, Cin, H, W = x.shape
    Cout = conv_w.shape[0]
    xf = x.astype(jnp.float32)
    p = xf.reshape(N, Cin, H // 2, 2, W // 2, 2).mean(axis=(3, 5))               # AvgPool2d(2,2)
    y = jnp.einsum('nchw,oc->nohw', p, conv_w.reshape(Cout, Cin).astype(jnp.float32),
                   precision=lax.Precision.HIGHEST)                              # 1x1 conv
    scale = gamma / jnp.sqrt(running_var + eps)
    shift = beta - running_mean * scale
    y = y * scale[None, :, None, None] + shift[None, :, None, None]              # BN (inference)
    return jnp.where(y >= 0.0, y, 0.1 * y)                                       # LeakyReLU(0.1)


if __name__ == "__main__":
    key = jax.random.PRNGKey(0)
    N, Cin, Cout, H, W = 2, 4, 8, 16, 16

    k_x, k_w, k_g, k_b, k_m, k_v = jax.random.split(key, 6)
    x = jax.random.normal(k_x, (N, Cin, H, W), dtype=jnp.float32)
    conv_w = jax.random.normal(k_w, (Cout, Cin, 1, 1), dtype=jnp.float32) * 0.1
    gamma = 1.0 + 0.1 * jax.random.normal(k_g, (Cout,), dtype=jnp.float32)
    beta = 0.1 * jax.random.normal(k_b, (Cout,), dtype=jnp.float32)
    running_mean = 0.1 * jax.random.normal(k_m, (Cout,), dtype=jnp.float32)
    running_var = jnp.abs(jax.random.normal(k_v, (Cout,), dtype=jnp.float32)) + 0.5

    out = efficient_downsample(x, conv_w, gamma, beta, running_mean, running_var)
    out = jax.block_until_ready(out)

    ref = _reference(x, conv_w, gamma, beta, running_mean, running_var)
    assert out.shape == (N, Cout, H // 2, W // 2), out.shape
    # Default MXU precision (bf16 multiplies, f32 accumulation) is used per the perf review,
    # so tolerances reflect ~1e-3 relative rounding on the pooling matmul (conv path is exact
    # f32 VPU FMAs at this channel count).
    assert jnp.allclose(out, ref, atol=3e-2, rtol=3e-2), "mismatch vs reference"

    print("KERNEL_OK")
</pallas_src>

<mosaic_0001>
module attributes {stable_mosaic.version = 11 : i64} {
  func.func @_downsample_kernel(%arg0: i32, %arg1: i32, %arg2: memref<1x4x8x32xf32, #tpu.memory_space<vmem>>, %arg3: memref<32x8xf32, #tpu.memory_space<vmem>>, %arg4: memref<8x4xf32, #tpu.memory_space<vmem>>, %arg5: memref<8x1xf32, #tpu.memory_space<vmem>>, %arg6: memref<1x8x8x8xf32, #tpu.memory_space<vmem>>) attributes {dimension_semantics = [#tpu.dimension_semantics<parallel>, #tpu.dimension_semantics<parallel>], iteration_bounds = array<i64: 2, 1>, scalar_prefetch = 0 : i64, scratch_operands = 0 : i64, tpu.core_type = #tpu.core_type<tc>, window_params = [{transform_indices = @transform_0, window_bounds = array<i64: 1, 4, 8, 32>}, {pipeline_mode = #tpu.pipeline_mode<synchronous>, transform_indices = @transform_1, window_bounds = array<i64: 32, 8>}, {pipeline_mode = #tpu.pipeline_mode<synchronous>, transform_indices = @transform_2, window_bounds = array<i64: 8, 4>}, {pipeline_mode = #tpu.pipeline_mode<synchronous>, transform_indices = @transform_3, window_bounds = array<i64: 8, 1>}, {transform_indices = @transform_4, window_bounds = array<i64: 1, 8, 8, 8>}]} {
    %c0 = arith.constant 0 : index
    %c0_0 = arith.constant 0 : index
    %c0_1 = arith.constant 0 : index
    %c0_2 = arith.constant 0 : index
    %0 = vector.load %arg2[%c0, %c0_0, %c0_1, %c0_2] : memref<1x4x8x32xf32, #tpu.memory_space<vmem>>, vector<1x4x8x32xf32>
    %1 = vector.shape_cast %0 : vector<1x4x8x32xf32> to vector<4x8x32xf32>
    %2 = vector.shape_cast %1 : vector<4x8x32xf32> to vector<32x32xf32>
    %c0_3 = arith.constant 0 : index
    %c0_4 = arith.constant 0 : index
    %3 = vector.load %arg3[%c0_3, %c0_4] : memref<32x8xf32, #tpu.memory_space<vmem>>, vector<32x8xf32>
    %cst = arith.constant dense<0.000000e+00> : vector<32x8xf32>
    %4 = tpu.matmul %2, %3, %cst {dimension_numbers = #tpu.dot_dimension_numbers<[1], [0], [0], [1], [0, 0, 1, 1], [], []>} : vector<32x32xf32>, vector<32x8xf32>, vector<32x8xf32> -> vector<32x8xf32>
    %5 = vector.shape_cast %4 : vector<32x8xf32> to vector<4x8x8xf32>
    %c0_5 = arith.constant 0 : index
    %c0_6 = arith.constant 0 : index
    %6 = vector.load %arg4[%c0_5, %c0_6] : memref<8x4xf32, #tpu.memory_space<vmem>>, vector<8x4xf32>
    %c0_7 = arith.constant 0 : index
    %c0_8 = arith.constant 0 : index
    %7 = vector.load %arg5[%c0_7, %c0_8] : memref<8x1xf32, #tpu.memory_space<vmem>>, vector<8x1xf32>
    %8 = vector.shape_cast %7 : vector<8x1xf32> to vector<8x1x1xf32>
    %9 = vector.shape_cast %8 : vector<8x1x1xf32> to vector<8x1x1xf32>
    %10 = vector.broadcast %9 : vector<8x1x1xf32> to vector<8x8x8xf32>
    %11 = vector.extract_strided_slice %6 {offsets = [0, 0], sizes = [8, 1], strides = [1, 1]} : vector<8x4xf32> to vector<8x1xf32>
    %12 = vector.shape_cast %11 : vector<8x1xf32> to vector<8xf32>
    %13 = vector.shape_cast %12 : vector<8xf32> to vector<8x1x1xf32>
    %14 = vector.extract_strided_slice %5 {offsets = [0, 0, 0], sizes = [1, 8, 8], strides = [1, 1, 1]} : vector<4x8x8xf32> to vector<1x8x8xf32>
    %15 = vector.shape_cast %14 : vector<1x8x8xf32> to vector<8x8xf32>
    %16 = vector.shape_cast %15 : vector<8x8xf32> to vector<1x8x8xf32>
    %17 = vector.broadcast %13 : vector<8x1x1xf32> to vector<8x8x8xf32>
    %18 = vector.broadcast %16 : vector<1x8x8xf32> to vector<8x8x8xf32>
    %19 = arith.mulf %17, %18 : vector<8x8x8xf32>
    %20 = arith.addf %10, %19 : vector<8x8x8xf32>
    %21 = vector.extract_strided_slice %6 {offsets = [0, 1], sizes = [8, 1], strides = [1, 1]} : vector<8x4xf32> to vector<8x1xf32>
    %22 = vector.shape_cast %21 : vector<8x1xf32> to vector<8xf32>
    %23 = vector.shape_cast %22 : vector<8xf32> to vector<8x1x1xf32>
    %24 = vector.extract_strided_slice %5 {offsets = [1, 0, 0], sizes = [1, 8, 8], strides = [1, 1, 1]} : vector<4x8x8xf32> to vector<1x8x8xf32>
    %25 = vector.shape_cast %24 : vector<1x8x8xf32> to vector<8x8xf32>
    %26 = vector.shape_cast %25 : vector<8x8xf32> to vector<1x8x8xf32>
    %27 = vector.broadcast %23 : vector<8x1x1xf32> to vector<8x8x8xf32>
    %28 = vector.broadcast %26 : vector<1x8x8xf32> to vector<8x8x8xf32>
    %29 = arith.mulf %27, %28 : vector<8x8x8xf32>
    %30 = arith.addf %20, %29 : vector<8x8x8xf32>
    %31 = vector.extract_strided_slice %6 {offsets = [0, 2], sizes = [8, 1], strides = [1, 1]} : vector<8x4xf32> to vector<8x1xf32>
    %32 = vector.shape_cast %31 : vector<8x1xf32> to vector<8xf32>
    %33 = vector.shape_cast %32 : vector<8xf32> to vector<8x1x1xf32>
    %34 = vector.extract_strided_slice %5 {offsets = [2, 0, 0], sizes = [1, 8, 8], strides = [1, 1, 1]} : vector<4x8x8xf32> to vector<1x8x8xf32>
    %35 = vector.shape_cast %34 : vector<1x8x8xf32> to vector<8x8xf32>
    %36 = vector.shape_cast %35 : vector<8x8xf32> to vector<1x8x8xf32>
    %37 = vector.broadcast %33 : vector<8x1x1xf32> to vector<8x8x8xf32>
    %38 = vector.broadcast %36 : vector<1x8x8xf32> to vector<8x8x8xf32>
    %39 = arith.mulf %37, %38 : vector<8x8x8xf32>
    %40 = arith.addf %30, %39 : vector<8x8x8xf32>
    %41 = vector.extract_strided_slice %6 {offsets = [0, 3], sizes = [8, 1], strides = [1, 1]} : vector<8x4xf32> to vector<8x1xf32>
    %42 = vector.shape_cast %41 : vector<8x1xf32> to vector<8xf32>
    %43 = vector.shape_cast %42 : vector<8xf32> to vector<8x1x1xf32>
    %44 = vector.extract_strided_slice %5 {offsets = [3, 0, 0], sizes = [1, 8, 8], strides = [1, 1, 1]} : vector<4x8x8xf32> to vector<1x8x8xf32>
    %45 = vector.shape_cast %44 : vector<1x8x8xf32> to vector<8x8xf32>
    %46 = vector.shape_cast %45 : vector<8x8xf32> to vector<1x8x8xf32>
    %47 = vector.broadcast %43 : vector<8x1x1xf32> to vector<8x8x8xf32>
    %48 = vector.broadcast %46 : vector<1x8x8xf32> to vector<8x8x8xf32>
    %49 = arith.mulf %47, %48 : vector<8x8x8xf32>
    %50 = arith.addf %40, %49 : vector<8x8x8xf32>
    %cst_9 = arith.constant 0.000000e+00 : f32
    %51 = vector.broadcast %cst_9 : f32 to vector<8x8x8xf32>
    %52 = arith.cmpf oge, %50, %51 : vector<8x8x8xf32>
    %cst_10 = arith.constant 1.000000e-01 : f32
    %53 = vector.broadcast %cst_10 : f32 to vector<8x8x8xf32>
    %54 = arith.mulf %53, %50 : vector<8x8x8xf32>
    %55 = arith.select %52, %50, %54 : vector<8x8x8xi1>, vector<8x8x8xf32>
    %c0_11 = arith.constant 0 : index
    %c0_12 = arith.constant 0 : index
    %c0_13 = arith.constant 0 : index
    %c0_14 = arith.constant 0 : index
    %56 = vector.load %arg6[%c0_11, %c0_12, %c0_13, %c0_14] : memref<1x8x8x8xf32, #tpu.memory_space<vmem>>, vector<1x8x8x8xf32>
    %57 = vector.shape_cast %56 : vector<1x8x8x8xf32> to vector<8x8x8xf32>
    %58 = vector.shape_cast %55 : vector<8x8x8xf32> to vector<1x8x8x8xf32>
    tpu.vector_store %arg6[%c0_11, %c0_12, %c0_13, %c0_14], %58 {strides = array<i32>} : memref<1x8x8x8xf32, #tpu.memory_space<vmem>>, vector<1x8x8x8xf32>,
    return
  }
  func.func @transform_0(%arg0: i32, %arg1: i32) -> (i32, i32, i32, i32) {
    %c0_i32 = arith.constant 0 : i32
    %c0_i32_0 = arith.constant 0 : i32
    %c0_i32_1 = arith.constant 0 : i32
    return %arg0, %c0_i32, %arg1, %c0_i32_0 : i32, i32, i32, i32
  }
  func.func @transform_1(%arg0: i32, %arg1: i32) -> (i32, i32) {
    %c0_i32 = arith.constant 0 : i32
    %c0_i32_0 = arith.constant 0 : i32
    %c0_i32_1 = arith.constant 0 : i32
    return %c0_i32, %c0_i32_0 : i32, i32
  }
  func.func @transform_2(%arg0: i32, %arg1: i32) -> (i32, i32) {
    %c0_i32 = arith.constant 0 : i32
    %c0_i32_0 = arith.constant 0 : i32
    %c0_i32_1 = arith.constant 0 : i32
    return %c0_i32, %c0_i32_0 : i32, i32
  }
  func.func @transform_3(%arg0: i32, %arg1: i32) -> (i32, i32) {
    %c0_i32 = arith.constant 0 : i32
    %c0_i32_0 = arith.constant 0 : i32
    %c0_i32_1 = arith.constant 0 : i32
    return %c0_i32, %c0_i32_0 : i32, i32
  }
  func.func @transform_4(%arg0: i32, %arg1: i32) -> (i32, i32, i32, i32) {
    %c0_i32 = arith.constant 0 : i32
    %c0_i32_0 = arith.constant 0 : i32
    %c0_i32_1 = arith.constant 0 : i32
    return %arg0, %c0_i32, %arg1, %c0_i32_0 : i32, i32, i32, i32
  }
}

</mosaic_0001>

<llo_original>
// kernel: tpu_custom_call.1
$region0: #{tpu_custom_call.1}
  #allocation0 [shape = 'u32[]', space=smem, size = 0x4, offset = 0x4, fixed_abs, tag = 'smem constant byte address 0x4 - core index']
  #allocation1 [shape = 'u32[144,128]{1,0:T(1,128)}', space=vmem, size = 0x12000, scoped, tag = 'internal scratch']
  %s0 = inlined_call_operand.hbm [shape: f32[2,4,8,32], index: 0, kind: input, shape index: {}]
  %s1 = inlined_call_operand.vmem [shape: f32[32,8], index: 1, kind: input, shape index: {}]
  %s2 = inlined_call_operand.vmem [shape: f32[8,4], index: 2, kind: input, shape index: {}]
  %s3 = inlined_call_operand.vmem [shape: f32[8,1], index: 3, kind: input, shape index: {}]
  %s4 = inlined_call_operand.hbm [shape: f32[2,8,8,8], index: 4, kind: output, shape index: {}]
  %s5 = sld [smem:[#allocation0]]
  $region53: #{tpu_custom_call.1} parent=0
    _
  %s7 = ssub.s32 1, %s5
  %s8 = scalar_select 0, %s7, %s5
  $region1: #{tpu_custom_call.1} parent=0
    #allocation2 [shape = 'u8[32768]{0}', space=vmem, size = 0x8000, scoped, tag = 'input window, operand 0']
    #allocation3 [shape = 's32[2]{0}', space=sflag, size = 0x8, scoped, tag = 'scoped memory for tpu_custom_call.1']
    #allocation4 [shape = 's32[2]{0}', space=sflag, size = 0x8, scoped, tag = 'scoped memory for tpu_custom_call.1']
    #allocation5 [shape = 'u8[65536]{0}', space=vmem, size = 0x10000, scoped, tag = 'output window, operand 0']
    %9 = vsyncpa [#allocation3], 0
    %s10 = scalar_lea.sflag [#allocation3], 1
    %11 = vsyncpa %s10, 0
    %12 = vsyncpa [#allocation4], 0
    %s13 = scalar_lea.sflag [#allocation4], 1
    %14 = vsyncpa %s13, 0
    loop: start=0, step=1, limit=4
    $region2: #{tpu_custom_call.1} parent=1 // loop_pre_header
      _
    $region3: #{tpu_custom_call.1} parent=1 // loop_header
      %s16 = sphi 0, %s20
      %p17 = scmp.ge.s32.totalorder %s16, 4
      %s23 = sphi 0, %s35
      %s24 = sphi 0, %s31
      %s25 = sphi 0, %s23
      %s26 = sphi 0, %s24
      %s27 = sphi 0, %s25
      %s28 = sphi 0, %s26
      %s40 = sphi 0, %s42
      %s43 = sphi 0, %s40
      %s44 = sphi 0, %s43
      %s60 = sphi 0, %s44
      %s64 = sphi 0, %s64
      %s66 = sphi 0, %s64
      %s67 = sphi 0, %s66
      %s81 = sphi 0, %s67
      %s85 = sphi 0, %s85
      %s87 = sphi 0, %s85
      %s88 = sphi 0, %s87
      %s102 = sphi 0, %s88
      %s106 = sphi 0, %s106
      %s108 = sphi 0, %s106
      %s109 = sphi 0, %s108
      %s123 = sphi 0, %s109
      %s131 = sphi 0, %s133
      %s134 = sphi 0, %s131
      %s135 = sphi 0, %s134
      %s151 = sphi 0, %s135
    $region4: #{tpu_custom_call.1} parent=1 // loop_header_branch
      %19 = sbr.rel (%p17) target = $region8
    $region5: #{tpu_custom_call.1} parent=1 // loop_body
      %s21 = ssub.s32 %s16, 1
      %s22 = ssub.s32 %s16, 2
      %s29 = sadd.s32 1, %s24
      %p30 = scmp.ge.s32.totalorder %s29, 1
      %s31 = scalar_select %p30, 0, %s29
      %s32 = sadd.s32 1, %s23
      %s33 = scalar_select %p30, %s32, %s23
      %p34 = scmp.ge.s32.totalorder %s33, 2
      %s35 = scalar_select %p34, 0, %s33
      %s36 = ssub.s32 %s23, %s35
      %s37 = ssub.s32 %s24, %s31
      %s38 = sor.u32 %s36, %s37
      %p39 = scmp.eq.s32.totalorder %s38, 0
      %s41 = sadd.s32 %s40, 1
      %s42 = scalar_select %p39, %s40, %s41
      %p45 = pneg %p39
      %p46 = scmp.eq.s32.totalorder %s16, 1
      %p47 = por %p45, %p46
      %p48 = scmp.ne.s32.totalorder %s40, %s43
      %p49 = scmp.eq.s32.totalorder %s16, 0
      %p50 = por %p48, %p49
      %p51 = scmp.ne.s32.totalorder %s40, %s43
      %p52 = scmp.eq.s32.totalorder %s21, 1
      %p53 = por %p51, %p52
      %p54 = scmp.ne.s32.totalorder %s43, %s44
      %p55 = scmp.eq.s32.totalorder %s21, 0
      %p56 = por %p54, %p55
      %p57 = scmp.ne.s32.totalorder %s43, %s44
      %p58 = scmp.eq.s32.totalorder %s22, 1
      %p59 = por %p57, %p58
      %p61 = scmp.ne.s32.totalorder %s44, %s60
      %p62 = scmp.eq.s32.totalorder %s22, 0
      %p63 = por %p61, %p62
      %s65 = sadd.s32 %s64, 1
      %p68 = scmp.eq.s32.totalorder %s16, 1
      %p69 = scmp.ne.s32.totalorder %s64, %s66
      %p70 = scmp.eq.s32.totalorder %s16, 0
      %p71 = por %p69, %p70
      %p72 = scmp.ne.s32.totalorder %s64, %s66
      %p73 = scmp.eq.s32.totalorder %s21, 1
      %p74 = por %p72, %p73
      %p75 = scmp.ne.s32.totalorder %s66, %s67
      %p76 = scmp.eq.s32.totalorder %s21, 0
      %p77 = por %p75, %p76
      %p78 = scmp.ne.s32.totalorder %s66, %s67
      %p79 = scmp.eq.s32.totalorder %s22, 1
      %p80 = por %p78, %p79
      %p82 = scmp.ne.s32.totalorder %s67, %s81
      %p83 = scmp.eq.s32.totalorder %s22, 0
      %p84 = por %p82, %p83
      %s86 = sadd.s32 %s85, 1
      %p89 = scmp.eq.s32.totalorder %s16, 1
      %p90 = scmp.ne.s32.totalorder %s85, %s87
      %p91 = scmp.eq.s32.totalorder %s16, 0
      %p92 = por %p90, %p91
      %p93 = scmp.ne.s32.totalorder %s85, %s87
      %p94 = scmp.eq.s32.totalorder %s21, 1
      %p95 = por %p93, %p94
      %p96 = scmp.ne.s32.totalorder %s87, %s88
      %p97 = scmp.eq.s32.totalorder %s21, 0
      %p98 = por %p96, %p97
      %p99 = scmp.ne.s32.totalorder %s87, %s88
      %p100 = scmp.eq.s32.totalorder %s22, 1
      %p101 = por %p99, %p100
      %p103 = scmp.ne.s32.totalorder %s88, %s102
      %p104 = scmp.eq.s32.totalorder %s22, 0
      %p105 = por %p103, %p104
      %s107 = sadd.s32 %s106, 1
      %p110 = scmp.eq.s32.totalorder %s16, 1
      %p111 = scmp.ne.s32.totalorder %s106, %s108
      %p112 = scmp.eq.s32.totalorder %s16, 0
      %p113 = por %p111, %p112
      %p114 = scmp.ne.s32.totalorder %s106, %s108
      %p115 = scmp.eq.s32.totalorder %s21, 1
      %p116 = por %p114, %p115
      %p117 = scmp.ne.s32.totalorder %s108, %s109
      %p118 = scmp.eq.s32.totalorder %s21, 0
      %p119 = por %p117, %p118
      %p120 = scmp.ne.s32.totalorder %s108, %s109
      %p121 = scmp.eq.s32.totalorder %s22, 1
      %p122 = por %p120, %p121
      %p124 = scmp.ne.s32.totalorder %s109, %s123
      %p125 = scmp.eq.s32.totalorder %s22, 0
      %p126 = por %p124, %p125
      %s127 = ssub.s32 %s23, %s35
      %s128 = ssub.s32 %s24, %s31
      %s129 = sor.u32 %s127, %s128
      %p130 = scmp.eq.s32.totalorder %s129, 0
      %s132 = sadd.s32 %s131, 1
      %s133 = scalar_select %p130, %s131, %s132
      %p136 = pneg %p130
      %p137 = scmp.eq.s32.totalorder %s16, 1
      %p138 = por %p136, %p137
      %p139 = scmp.ne.s32.totalorder %s131, %s134
      %p140 = scmp.eq.s32.totalorder %s16, 0
      %p141 = por %p139, %p140
      %p142 = scmp.ne.s32.totalorder %s131, %s134
      %p143 = scmp.eq.s32.totalorder %s21, 1
      %p144 = por %p142, %p143
      %p145 = scmp.ne.s32.totalorder %s134, %s135
      %p146 = scmp.eq.s32.totalorder %s21, 0
      %p147 = por %p145, %p146
      %p148 = scmp.ne.s32.totalorder %s134, %s135
      %p149 = scmp.eq.s32.totalorder %s22, 1
      %p150 = por %p148, %p149
      %p152 = scmp.ne.s32.totalorder %s135, %s151
      %p153 = scmp.eq.s32.totalorder %s22, 0
      %p154 = por %p152, %p153
      %p155 = scmp.le.s32.totalorder 1, %s16
      %p156 = scmp.lt.s32.totalorder %s16, 3
      %p157 = pnand %p155, %p156
      %p158 = pneg %p157
      // Predicated region
      $region9: #{tpu_custom_call.1} parent=5 // pred_check
        _
      $region10: #{tpu_custom_call.1} parent=5 // pred_check_branch
        %160 = sbr.rel (%p157) target = $region12
      $region11: #{tpu_custom_call.1} parent=5 // pred_region
        %s161 = ssub.s32 %s16, 1
        // Predicated region
        $region13: #{tpu_custom_call.1} parent=11 // pred_check
          %p162 = pneg %p77
        $region14: #{tpu_custom_call.1} parent=11 // pred_check_branch
          %164 = sbr.rel (%p162) target = $region16
        $region15: #{tpu_custom_call.1} parent=11 // pred_region
          _
        $region16: #{tpu_custom_call.1} parent=11 // pred_fallthru
          _
        // Predicated region
        $region17: #{tpu_custom_call.1} parent=11 // pred_check
          %p165 = pneg %p98
        $region18: #{tpu_custom_call.1} parent=11 // pred_check_branch
          %167 = sbr.rel (%p165) target = $region20
        $region19: #{tpu_custom_call.1} parent=11 // pred_region
          _
        $region20: #{tpu_custom_call.1} parent=11 // pred_fallthru
          _
        // Predicated region
        $region21: #{tpu_custom_call.1} parent=11 // pred_check
          %p168 = pneg %p119
        $region22: #{tpu_custom_call.1} parent=11 // pred_check_branch
          %170 = sbr.rel (%p168) target = $region24
        $region23: #{tpu_custom_call.1} parent=11 // pred_region
          _
        $region24: #{tpu_custom_call.1} parent=11 // pred_fallthru
          _
      $region12: #{tpu_custom_call.1} parent=5 // pred_fallthru
        _
      %p171 = scmp.lt.s32.totalorder %s16, 2
      // Predicated region
      $region25: #{tpu_custom_call.1} parent=5 // pred_check
        %p172 = pneg %p171
      $region26: #{tpu_custom_call.1} parent=5 // pred_check_branch
        %174 = sbr.rel (%p172) target = $region28
      $region27: #{tpu_custom_call.1} parent=5 // pred_region
        // Predicated region
        $region29: #{tpu_custom_call.1} parent=27 // pred_check
          %p175 = pneg %p50
        $region30: #{tpu_custom_call.1} parent=27 // pred_check_branch
          %177 = sbr.rel (%p175) target = $region32
        $region31: #{tpu_custom_call.1} parent=27 // pred_region
          %s178 = sand.u32 %s40, 1
          %s179 = scalar_lea.sflag [#allocation3], %s178
          %s180 = sand.u32 %s40, 1
          %s181 = smul.addr %s180, 32
          %s182 = scalar_lea.vmem [#allocation2], %s181
          %s184 = ssub.s32 512, 512
          %185 = vsyncadd %s179, %s184
          %s186 = smul.addr %s23, 4
          %s187 = sadd.s32 %s24, %s186
          %s188 = smul.addr %s187, 128
          %s189 = scalar_lea.hbm %s0, %s188
          %s190 = sshll.u32 %s182, 4
          %s191 = int_to_ptr.vmem [resolvable:$true] %s190
          %196 = dma.hbm_to_vmem [thread:$0]  %s189, 512, %s191, %s179, 128, 128, 8
        $region32: #{tpu_custom_call.1} parent=27 // pred_fallthru
          _
      $region28: #{tpu_custom_call.1} parent=5 // pred_fallthru
        _
      %p197 = scmp.le.s32.totalorder 1, %s16
      %p198 = scmp.lt.s32.totalorder %s16, 3
      %p199 = pnand %p197, %p198
      %p200 = pneg %p199
      // Predicated region
      $region33: #{tpu_custom_call.1} parent=5 // pred_check
        _
      $region34: #{tpu_custom_call.1} parent=5 // pred_check_branch
        %202 = sbr.rel (%p199) target = $region36
      $region35: #{tpu_custom_call.1} parent=5 // pred_region
        %s203 = ssub.s32 %s16, 1
        %s204 = sand.u32 %s43, 1
        %s205 = scalar_lea.sflag [#allocation3], %s204
        %s206 = sand.u32 %s43, 1
        %s207 = smul.addr %s206, 32
        %s208 = scalar_lea.vmem [#allocation2], %s207
        // Predicated region
        $region37: #{tpu_custom_call.1} parent=35 // pred_check
          %p209 = pneg %p56
        $region38: #{tpu_custom_call.1} parent=35 // pred_check_branch
          %211 = sbr.rel (%p209) target = $region40
        $region39: #{tpu_custom_call.1} parent=35 // pred_region
          %212 = dma.done %s205, 512
        $region40: #{tpu_custom_call.1} parent=35 // pred_fallthru
          _
        %s213 = sand.u32 %s43, 1
        %s214 = scalar_lea.sflag [#allocation3], %s213
        %s215 = sand.u32 %s43, 1
        %s216 = smul.addr %s215, 32
        %s217 = scalar_lea.vmem [#allocation2], %s216
        %p218 = pneg %p56
        %p219 = pneg %p53
        %p220 = pneg %p77
        %p221 = pneg %p74
        %p222 = pneg %p98
        %p223 = pneg %p95
        %p224 = pneg %p119
        %p225 = pneg %p116
        %p226 = pneg %p147
        %p227 = pneg %p144
        %s228 = sand.u32 %s134, 1
        %s229 = scalar_lea.sflag [#allocation4], %s228
        %s230 = sand.u32 %s134, 1
        %s231 = smul.addr %s230, 64
        %s232 = scalar_lea.vmem [#allocation5], %s231
        %v233 = vld [vmem:[%s208] sm:$0xff]
        %v234 = vld [vmem:[%s208 + $0x8] sm:$0xff]
        %v235 = vld [vmem:[%s208 + $0x10] sm:$0xff]
        %v236 = vld [vmem:[%s208 + $0x18] sm:$0xff]
        %v237 = vld [vmem:[%s1] sm:$0xff]
        %v238 = vld [vmem:[%s1 + $0x8] sm:$0xff]
        %v239 = vld [vmem:[%s1 + $0x10] sm:$0xff]
        %v240 = vld [vmem:[%s1 + $0x18] sm:$0xff]
        %vm241 = vcmask 261120
        %v243 = vsel %vm241, %v233, 0
        %v246 = vsel %vm241, %v234, 0
        %v249 = vsel %vm241, %v235, 0
        %v252 = vsel %vm241, %v236, 0
        %254 = vmatprep.subr.mxu0 0.0
        %255 = vmatpush1.msra.mxu0 0.0
        %256 = vmatprep.subr.mxu0 0.0
        %257 = vmatpush1.msra.mxu0 0.0
        %258 = vmatprep.subr.mxu0 0.0
        %259 = vmatpush1.msra.mxu0 0.0
        %260 = vmatprep.subr.mxu0 0.0
        %261 = vmatpush1.msra.mxu0 0.0
        %262 = vmatprep.subr.mxu0 0.0
        %263 = vmatpush1.msra.mxu0 0.0
        %264 = vmatprep.subr.mxu0 0.0
        %265 = vmatpush1.msra.mxu0 0.0
        %266 = vmatprep.subr.mxu0 0.0
        %267 = vmatpush1.msra.mxu0 0.0
        %268 = vmatprep.subr.mxu0 0.0
        %269 = vmatpush1.msra.mxu0 0.0
        %270 = vmatprep.subr.mxu0 0.0
        %271 = vmatpush1.msra.mxu0 0.0
        %272 = vmatprep.subr.mxu0 0.0
        %273 = vmatpush1.msra.mxu0 0.0
        %274 = vmatprep.subr.mxu0 0.0
        %275 = vmatpush1.msra.mxu0 0.0
        %276 = vmatprep.subr.mxu0 0.0
        %277 = vmatpush1.msra.mxu0 0.0
        %278 = vmatprep.subr.mxu0 0.0
        %279 = vmatpush1.msra.mxu0 %v240
        %280 = vmatprep.subr.mxu0 0.0
        %281 = vmatpush1.msra.mxu0 %v239
        %282 = vmatprep.subr.mxu0 0.0
        %283 = vmatpush1.msra.mxu0 %v238
        %284 = vmatprep.subr.mxu0 0.0
        %285 = vmatpush1.msra.mxu0 %v237
        %286 = vmatprep.subr.mxu0 0.0
        %287 = vmatpush2.msra.mxu0 0.0
        %288 = vmatprep.subr.mxu0 0.0
        %289 = vmatpush2.msra.mxu0 0.0
        %290 = vmatprep.subr.mxu0 0.0
        %291 = vmatpush2.msra.mxu0 0.0
        %292 = vmatprep.subr.mxu0 0.0
        %293 = vmatpush2.msra.mxu0 0.0
        %294 = vmatprep.subr.mxu0 0.0
        %295 = vmatpush2.msra.mxu0 0.0
        %296 = vmatprep.subr.mxu0 0.0
        %297 = vmatpush2.msra.mxu0 0.0
        %298 = vmatprep.subr.mxu0 0.0
        %299 = vmatpush2.msra.mxu0 0.0
        %300 = vmatprep.subr.mxu0 0.0
        %301 = vmatpush2.msra.mxu0 0.0
        %302 = vmatprep.subr.mxu0 0.0
        %303 = vmatpush2.msra.mxu0 0.0
        %304 = vmatprep.subr.mxu0 0.0
        %305 = vmatpush2.msra.mxu0 0.0
        %306 = vmatprep.subr.mxu0 0.0
        %307 = vmatpush2.msra.mxu0 0.0
        %308 = vmatprep.subr.mxu0 0.0
        %309 = vmatpush2.msra.mxu0 0.0
        %310 = vmatprep.subr.mxu0 0.0
        %311 = vmatpush2.msra.mxu0 0.0
        %312 = vmatprep.subr.mxu0 0.0
        %313 = vmatpush2.msra.mxu0 0.0
        %314 = vmatprep.subr.mxu0 0.0
        %315 = vmatpush2.msra.mxu0 0.0
        %316 = vmatprep.subr.mxu0 0.0
        %317 = vmatpush2.msra.mxu0 0.0
        %318 = vmatprep.mubr.f32.mxu0 0.0
        %319 = vmatmul.mubr.f32.gmra.mxu0 %v243
        %v320 = vpop.f32.mrf.mxu0
        %v321 = vadd.f32 0.0, %v320
        %v322 = vpop.f32.mrf.mxu0
        %323 = vmatprep.mubr.f32.mxu0 0.0
        %324 = vmatmul.mubr.f32.gmra.mxu0 %v246
        %v325 = vpop.f32.mrf.mxu0
        %v326 = vadd.f32 0.0, %v325
        %v327 = vpop.f32.mrf.mxu0
        %328 = vmatprep.mubr.f32.mxu0 0.0
        %329 = vmatmul.mubr.f32.gmra.mxu0 %v249
        %v330 = vpop.f32.mrf.mxu0
        %v331 = vadd.f32 0.0, %v330
        %v332 = vpop.f32.mrf.mxu0
        %333 = vmatprep.mubr.f32.mxu0 0.0
        %334 = vmatmul.mubr.f32.gmra.mxu0 %v252
        %v335 = vpop.f32.mrf.mxu0
        %v336 = vadd.f32 0.0, %v335
        %v337 = vpop.f32.mrf.mxu0
        %338 = vdwg.mxu0
        %v339 = vld [vmem:[%s2] sm:$0xff]
        %v340 = vld [vmem:[%s3] sm:$0xff]
        %v342 = vcombine.high %v340, %v340
        %v344 = vunpack.c.l.s4 1966171168
        %v345 = vunpack.c.0.s8 %v344
        %v346 = vlaneseq
        %v347 = vshrl.u32 %v346, 7
        %v348 = vsub.s32 %v345, %v347
        %v349 = vrot.slane %v340, %v348
        %v351 = vunpack.c.l.s4 1966171168
        %v352 = vunpack.c.0.s8 %v351
        %v353 = vlaneseq
        %v354 = vshrl.u32 %v353, 7
        %v355 = vsub.s32 %v352, %v354
        %v356 = vrot.slane %v342, %v355
        %v357 = vcombine.high %v349, %v349
        %v358 = vcombine.high %v356, %v356
        %v360 = vunpack.c.l.s4 1966171168
        %v361 = vunpack.c.0.s8 %v360
        %v362 = vlaneseq
        %v363 = vshrl.u32 %v362, 7
        %v364 = vsub.s32 %v361, %v363
        %v365 = vrot.slane %v349, %v364
        %v367 = vunpack.c.l.s4 1966171168
        %v368 = vunpack.c.0.s8 %v367
        %v369 = vlaneseq
        %v370 = vshrl.u32 %v369, 7
        %v371 = vsub.s32 %v368, %v370
        %v372 = vrot.slane %v356, %v371
        %v374 = vunpack.c.l.s4 1966171168
        %v375 = vunpack.c.0.s8 %v374
        %v376 = vlaneseq
        %v377 = vshrl.u32 %v376, 7
        %v378 = vsub.s32 %v375, %v377
        %v379 = vrot.slane %v357, %v378
        %v381 = vunpack.c.l.s4 1966171168
        %v382 = vunpack.c.0.s8 %v381
        %v383 = vlaneseq
        %v384 = vshrl.u32 %v383, 7
        %v385 = vsub.s32 %v382, %v384
        %v386 = vrot.slane %v358, %v385
        %v387 = vcombine.high %v365, %v365
        %v388 = vcombine.high %v372, %v372
        %v389 = vcombine.high %v379, %v379
        %v390 = vcombine.high %v386, %v386
        %v391 = vlaneseq
        %v392 = vshrl.u32 %v391, 7
        %v393 = vsub.s32 0, %v392
        %v394 = vrot.slane %v365, %v393
        %v395 = vlaneseq
        %v396 = vshrl.u32 %v395, 7
        %v397 = vsub.s32 0, %v396
        %v398 = vrot.slane %v379, %v397
        %v399 = vlaneseq
        %v400 = vshrl.u32 %v399, 7
        %v401 = vsub.s32 0, %v400
        %v402 = vrot.slane %v387, %v401
        %v403 = vlaneseq
        %v404 = vshrl.u32 %v403, 7
        %v405 = vsub.s32 0, %v404
        %v406 = vrot.slane %v389, %v405
        %v407 = vlaneseq
        %v408 = vshrl.u32 %v407, 7
        %v409 = vsub.s32 0, %v408
        %v410 = vrot.slane %v372, %v409
        %v411 = vlaneseq
        %v412 = vshrl.u32 %v411, 7
        %v413 = vsub.s32 0, %v412
        %v414 = vrot.slane %v386, %v413
        %v415 = vlaneseq
        %v416 = vshrl.u32 %v415, 7
        %v417 = vsub.s32 0, %v416
        %v418 = vrot.slane %v388, %v417
        %v419 = vlaneseq
        %v420 = vshrl.u32 %v419, 7
        %v421 = vsub.s32 0, %v420
        %v422 = vrot.slane %v390, %v421
        %423 = vset.pattern.permute.xlu0 0
        %424 = vperm.xlu0 %423, %v394
        %v425 = vpop.permute.xlu0 %424
        %427 = vset.pattern.permute.xlu0 0
        %428 = vperm.xlu0 %427, %v398
        %v429 = vpop.permute.xlu0 %428
        %431 = vset.pattern.permute.xlu0 0
        %432 = vperm.xlu0 %431, %v402
        %v433 = vpop.permute.xlu0 %432
        %435 = vset.pattern.permute.xlu0 0
        %436 = vperm.xlu0 %435, %v406
        %v437 = vpop.permute.xlu0 %436
        %439 = vset.pattern.permute.xlu0 0
        %440 = vperm.xlu0 %439, %v410
        %v441 = vpop.permute.xlu0 %440
        %443 = vset.pattern.permute.xlu0 0
        %444 = vperm.xlu0 %443, %v414
        %v445 = vpop.permute.xlu0 %444
        %447 = vset.pattern.permute.xlu0 0
        %448 = vperm.xlu0 %447, %v418
        %v449 = vpop.permute.xlu0 %448
        %451 = vset.pattern.permute.xlu0 0
        %452 = vperm.xlu0 %451, %v422
        %v453 = vpop.permute.xlu0 %452
        %v456 = vcombine.high %v339, %v339
        %v458 = vunpack.c.l.s4 1966171168
        %v459 = vunpack.c.0.s8 %v458
        %v460 = vlaneseq
        %v461 = vshrl.u32 %v460, 7
        %v462 = vsub.s32 %v459, %v461
        %v463 = vrot.slane %v339, %v462
        %v465 = vunpack.c.l.s4 1966171168
        %v466 = vunpack.c.0.s8 %v465
        %v467 = vlaneseq
        %v468 = vshrl.u32 %v467, 7
        %v469 = vsub.s32 %v466, %v468
        %v470 = vrot.slane %v456, %v469
        %v471 = vcombine.high %v463, %v463
        %v472 = vcombine.high %v470, %v470
        %v474 = vunpack.c.l.s4 1966171168
        %v475 = vunpack.c.0.s8 %v474
        %v476 = vlaneseq
        %v477 = vshrl.u32 %v476, 7
        %v478 = vsub.s32 %v475, %v477
        %v479 = vrot.slane %v463, %v478
        %v481 = vunpack.c.l.s4 1966171168
        %v482 = vunpack.c.0.s8 %v481
        %v483 = vlaneseq
        %v484 = vshrl.u32 %v483, 7
        %v485 = vsub.s32 %v482, %v484
        %v486 = vrot.slane %v470, %v485
        %v488 = vunpack.c.l.s4 1966171168
        %v489 = vunpack.c.0.s8 %v488
        %v490 = vlaneseq
        %v491 = vshrl.u32 %v490, 7
        %v492 = vsub.s32 %v489, %v491
        %v493 = vrot.slane %v471, %v492
        %v495 = vunpack.c.l.s4 1966171168
        %v496 = vunpack.c.0.s8 %v495
        %v497 = vlaneseq
        %v498 = vshrl.u32 %v497, 7
        %v499 = vsub.s32 %v496, %v498
        %v500 = vrot.slane %v472, %v499
        %v501 = vcombine.high %v479, %v479
        %v502 = vcombine.high %v486, %v486
        %v503 = vcombine.high %v493, %v493
        %v504 = vcombine.high %v500, %v500
        %v505 = vlaneseq
        %v506 = vshrl.u32 %v505, 7
        %v507 = vsub.s32 0, %v506
        %v508 = vrot.slane %v479, %v507
        %v509 = vlaneseq
        %v510 = vshrl.u32 %v509, 7
        %v511 = vsub.s32 0, %v510
        %v512 = vrot.slane %v493, %v511
        %v513 = vlaneseq
        %v514 = vshrl.u32 %v513, 7
        %v515 = vsub.s32 0, %v514
        %v516 = vrot.slane %v501, %v515
        %v517 = vlaneseq
        %v518 = vshrl.u32 %v517, 7
        %v519 = vsub.s32 0, %v518
        %v520 = vrot.slane %v503, %v519
        %v521 = vlaneseq
        %v522 = vshrl.u32 %v521, 7
        %v523 = vsub.s32 0, %v522
        %v524 = vrot.slane %v486, %v523
        %v525 = vlaneseq
        %v526 = vshrl.u32 %v525, 7
        %v527 = vsub.s32 0, %v526
        %v528 = vrot.slane %v500, %v527
        %v529 = vlaneseq
        %v530 = vshrl.u32 %v529, 7
        %v531 = vsub.s32 0, %v530
        %v532 = vrot.slane %v502, %v531
        %v533 = vlaneseq
        %v534 = vshrl.u32 %v533, 7
        %v535 = vsub.s32 0, %v534
        %v536 = vrot.slane %v504, %v535
        %537 = vset.pattern.permute.xlu0 0
        %538 = vperm.xlu0 %537, %v508
        %v539 = vpop.permute.xlu0 %538
        %541 = vset.pattern.permute.xlu0 0
        %542 = vperm.xlu0 %541, %v512
        %v543 = vpop.permute.xlu0 %542
        %545 = vset.pattern.permute.xlu0 0
        %546 = vperm.xlu0 %545, %v516
        %v547 = vpop.permute.xlu0 %546
        %549 = vset.pattern.permute.xlu0 0
        %550 = vperm.xlu0 %549, %v520
        %v551 = vpop.permute.xlu0 %550
        %553 = vset.pattern.permute.xlu0 0
        %554 = vperm.xlu0 %553, %v524
        %v555 = vpop.permute.xlu0 %554
        %557 = vset.pattern.permute.xlu0 0
        %558 = vperm.xlu0 %557, %v528
        %v559 = vpop.permute.xlu0 %558
        %561 = vset.pattern.permute.xlu0 0
        %562 = vperm.xlu0 %561, %v532
        %v563 = vpop.permute.xlu0 %562
        %565 = vset.pattern.permute.xlu0 0
        %566 = vperm.xlu0 %565, %v536
        %v567 = vpop.permute.xlu0 %566
        %v569 = vmul.f32 %v539, %v321
        %v570 = vmul.f32 %v543, %v321
        %v571 = vmul.f32 %v547, %v321
        %v572 = vmul.f32 %v551, %v321
        %v573 = vmul.f32 %v555, %v321
        %v574 = vmul.f32 %v559, %v321
        %v575 = vmul.f32 %v563, %v321
        %v576 = vmul.f32 %v567, %v321
        %v577 = vadd.f32 %v425, %v569
        %v578 = vadd.f32 %v429, %v570
        %v579 = vadd.f32 %v433, %v571
        %v580 = vadd.f32 %v437, %v572
        %v581 = vadd.f32 %v441, %v573
        %v582 = vadd.f32 %v445, %v574
        %v583 = vadd.f32 %v449, %v575
        %v584 = vadd.f32 %v453, %v576
        %585 = vset.pattern.permute.xlu0 1
        %586 = vperm.xlu0 %585, %v508
        %v587 = vpop.permute.xlu0 %586
        %589 = vset.pattern.permute.xlu0 1
        %590 = vperm.xlu0 %589, %v512
        %v591 = vpop.permute.xlu0 %590
        %593 = vset.pattern.permute.xlu0 1
        %594 = vperm.xlu0 %593, %v516
        %v595 = vpop.permute.xlu0 %594
        %597 = vset.pattern.permute.xlu0 1
        %598 = vperm.xlu0 %597, %v520
        %v599 = vpop.permute.xlu0 %598
        %601 = vset.pattern.permute.xlu0 1
        %602 = vperm.xlu0 %601, %v524
        %v603 = vpop.permute.xlu0 %602
        %605 = vset.pattern.permute.xlu0 1
        %606 = vperm.xlu0 %605, %v528
        %v607 = vpop.permute.xlu0 %606
        %609 = vset.pattern.permute.xlu0 1
        %610 = vperm.xlu0 %609, %v532
        %v611 = vpop.permute.xlu0 %610
        %613 = vset.pattern.permute.xlu0 1
        %614 = vperm.xlu0 %613, %v536
        %v615 = vpop.permute.xlu0 %614
        %v617 = vmul.f32 %v587, %v326
        %v618 = vmul.f32 %v591, %v326
        %v619 = vmul.f32 %v595, %v326
        %v620 = vmul.f32 %v599, %v326
        %v621 = vmul.f32 %v603, %v326
        %v622 = vmul.f32 %v607, %v326
        %v623 = vmul.f32 %v611, %v326
        %v624 = vmul.f32 %v615, %v326
        %v625 = vadd.f32 %v577, %v617
        %v626 = vadd.f32 %v578, %v618
        %v627 = vadd.f32 %v579, %v619
        %v628 = vadd.f32 %v580, %v620
        %v629 = vadd.f32 %v581, %v621
        %v630 = vadd.f32 %v582, %v622
        %v631 = vadd.f32 %v583, %v623
        %v632 = vadd.f32 %v584, %v624
        %633 = vset.pattern.permute.xlu0 2
        %634 = vperm.xlu0 %633, %v508
        %v635 = vpop.permute.xlu0 %634
        %637 = vset.pattern.permute.xlu0 2
        %638 = vperm.xlu0 %637, %v512
        %v639 = vpop.permute.xlu0 %638
        %641 = vset.pattern.permute.xlu0 2
        %642 = vperm.xlu0 %641, %v516
        %v643 = vpop.permute.xlu0 %642
        %645 = vset.pattern.permute.xlu0 2
        %646 = vperm.xlu0 %645, %v520
        %v647 = vpop.permute.xlu0 %646
        %649 = vset.pattern.permute.xlu0 2
        %650 = vperm.xlu0 %649, %v524
        %v651 = vpop.permute.xlu0 %650
        %653 = vset.pattern.permute.xlu0 2
        %654 = vperm.xlu0 %653, %v528
        %v655 = vpop.permute.xlu0 %654
        %657 = vset.pattern.permute.xlu0 2
        %658 = vperm.xlu0 %657, %v532
        %v659 = vpop.permute.xlu0 %658
        %661 = vset.pattern.permute.xlu0 2
        %662 = vperm.xlu0 %661, %v536
        %v663 = vpop.permute.xlu0 %662
        %v665 = vmul.f32 %v635, %v331
        %v666 = vmul.f32 %v639, %v331
        %v667 = vmul.f32 %v643, %v331
        %v668 = vmul.f32 %v647, %v331
        %v669 = vmul.f32 %v651, %v331
        %v670 = vmul.f32 %v655, %v331
        %v671 = vmul.f32 %v659, %v331
        %v672 = vmul.f32 %v663, %v331
        %v673 = vadd.f32 %v625, %v665
        %v674 = vadd.f32 %v626, %v666
        %v675 = vadd.f32 %v627, %v667
        %v676 = vadd.f32 %v628, %v668
        %v677 = vadd.f32 %v629, %v669
        %v678 = vadd.f32 %v630, %v670
        %v679 = vadd.f32 %v631, %v671
        %v680 = vadd.f32 %v632, %v672
        %681 = vset.pattern.permute.xlu0 3
        %682 = vperm.xlu0 %681, %v508
        %v683 = vpop.permute.xlu0 %682
        %685 = vset.pattern.permute.xlu0 3
        %686 = vperm.xlu0 %685, %v512
        %v687 = vpop.permute.xlu0 %686
        %689 = vset.pattern.permute.xlu0 3
        %690 = vperm.xlu0 %689, %v516
        %v691 = vpop.permute.xlu0 %690
        %693 = vset.pattern.permute.xlu0 3
        %694 = vperm.xlu0 %693, %v520
        %v695 = vpop.permute.xlu0 %694
        %697 = vset.pattern.permute.xlu0 3
        %698 = vperm.xlu0 %697, %v524
        %v699 = vpop.permute.xlu0 %698
        %701 = vset.pattern.permute.xlu0 3
        %702 = vperm.xlu0 %701, %v528
        %v703 = vpop.permute.xlu0 %702
        %705 = vset.pattern.permute.xlu0 3
        %706 = vperm.xlu0 %705, %v532
        %v707 = vpop.permute.xlu0 %706
        %709 = vset.pattern.permute.xlu0 3
        %710 = vperm.xlu0 %709, %v536
        %v711 = vpop.permute.xlu0 %710
        %v713 = vmul.f32 %v683, %v336
        %v714 = vmul.f32 %v687, %v336
        %v715 = vmul.f32 %v691, %v336
        %v716 = vmul.f32 %v695, %v336
        %v717 = vmul.f32 %v699, %v336
        %v718 = vmul.f32 %v703, %v336
        %v719 = vmul.f32 %v707, %v336
        %v720 = vmul.f32 %v711, %v336
        %v721 = vadd.f32 %v673, %v713
        %v722 = vadd.f32 %v674, %v714
        %v723 = vadd.f32 %v675, %v715
        %v724 = vadd.f32 %v676, %v716
        %v725 = vadd.f32 %v677, %v717
        %v726 = vadd.f32 %v678, %v718
        %v727 = vadd.f32 %v679, %v719
        %v728 = vadd.f32 %v680, %v720
        %vm729 = vcmp.ge.f32.partialorder %v721, 0.0
        %vm730 = vcmp.ge.f32.partialorder %v722, 0.0
        %vm731 = vcmp.ge.f32.partialorder %v723, 0.0
        %vm732 = vcmp.ge.f32.partialorder %v724, 0.0
        %vm733 = vcmp.ge.f32.partialorder %v725, 0.0
        %vm734 = vcmp.ge.f32.partialorder %v726, 0.0
        %vm735 = vcmp.ge.f32.partialorder %v727, 0.0
        %vm736 = vcmp.ge.f32.partialorder %v728, 0.0
        %v737 = vmul.f32 %v721, 0.1
        %v738 = vmul.f32 %v722, 0.1
        %v739 = vmul.f32 %v723, 0.1
        %v740 = vmul.f32 %v724, 0.1
        %v741 = vmul.f32 %v725, 0.1
        %v742 = vmul.f32 %v726, 0.1
        %v743 = vmul.f32 %v727, 0.1
        %v744 = vmul.f32 %v728, 0.1
        %v745 = vsel %vm729, %v721, %v737
        %v746 = vsel %vm730, %v722, %v738
        %v747 = vsel %vm731, %v723, %v739
        %v748 = vsel %vm732, %v724, %v740
        %v749 = vsel %vm733, %v725, %v741
        %v750 = vsel %vm734, %v726, %v742
        %v751 = vsel %vm735, %v727, %v743
        %v752 = vsel %vm736, %v728, %v744
        %vm753 = vcmask 64512
        %754 = vst.msk [vmem:[%s232] sm:$0xff] %vm753, %v745
        %755 = vst.msk [vmem:[%s232 + $0x8] sm:$0xff] %vm753, %v746
        %756 = vst.msk [vmem:[%s232 + $0x10] sm:$0xff] %vm753, %v747
        %757 = vst.msk [vmem:[%s232 + $0x18] sm:$0xff] %vm753, %v748
        %758 = vst.msk [vmem:[%s232 + $0x20] sm:$0xff] %vm753, %v749
        %759 = vst.msk [vmem:[%s232 + $0x28] sm:$0xff] %vm753, %v750
        %760 = vst.msk [vmem:[%s232 + $0x30] sm:$0xff] %vm753, %v751
        %761 = vst.msk [vmem:[%s232 + $0x38] sm:$0xff] %vm753, %v752
        %s762 = sand.u32 %s134, 1
        %s763 = scalar_lea.sflag [#allocation4], %s762
        %s764 = sand.u32 %s134, 1
        %s765 = smul.addr %s764, 64
        %s766 = scalar_lea.vmem [#allocation5], %s765
        // Predicated region
        $region41: #{tpu_custom_call.1} parent=35 // pred_check
          %p767 = pneg %p144
        $region42: #{tpu_custom_call.1} parent=35 // pred_check_branch
          %769 = sbr.rel (%p767) target = $region44
        $region43: #{tpu_custom_call.1} parent=35 // pred_region
          %s771 = ssub.s32 1024, 1024
          %772 = vsyncadd %s763, %s771
          %s773 = smul.addr %s25, 8
          %s774 = sadd.s32 %s26, %s773
          %s775 = smul.addr %s774, 128
          %s776 = scalar_lea.hbm %s4, %s775
          %s777 = sshll.u32 %s766, 4
          %s778 = int_to_ptr.vmem [resolvable:$true] %s777
          %783 = dma.vmem_to_hbm [thread:$0]  %s778, 1024, %s776, %s763, 128, 128, 8
        $region44: #{tpu_custom_call.1} parent=35 // pred_fallthru
          _
      $region36: #{tpu_custom_call.1} parent=5 // pred_fallthru
        _
      %p784 = scmp.le.s32.totalorder 2, %s16
      // Predicated region
      $region45: #{tpu_custom_call.1} parent=5 // pred_check
        %p785 = pneg %p784
      $region46: #{tpu_custom_call.1} parent=5 // pred_check_branch
        %787 = sbr.rel (%p785) target = $region48
      $region47: #{tpu_custom_call.1} parent=5 // pred_region
        %s788 = ssub.s32 %s16, 2
        // Predicated region
        $region49: #{tpu_custom_call.1} parent=47 // pred_check
          %p789 = pneg %p150
        $region50: #{tpu_custom_call.1} parent=47 // pred_check_branch
          %791 = sbr.rel (%p789) target = $region52
        $region51: #{tpu_custom_call.1} parent=47 // pred_region
          %s792 = sand.u32 %s135, 1
          %s793 = scalar_lea.sflag [#allocation4], %s792
          %s794 = sand.u32 %s135, 1
          %s795 = smul.addr %s794, 64
          %s796 = scalar_lea.vmem [#allocation5], %s795
          %797 = dma.done %s793, 1024
        $region52: #{tpu_custom_call.1} parent=47 // pred_fallthru
          _
      $region48: #{tpu_custom_call.1} parent=5 // pred_fallthru
        _
    $region6: #{tpu_custom_call.1} parent=1 // loop_footer
      %s20 = sadd.s32 1, %s16
    $region7: #{tpu_custom_call.1} parent=1 // loop_footer_branch
      %15 = sbr.rel target = $region3
    $region8: #{tpu_custom_call.1} parent=1 // loop_exit
      _
    %798 = vsyncpa [#allocation3], 1
    %s799 = scalar_lea.sflag [#allocation3], 1
    %800 = vsyncpa %s799, 1
    %801 = vsyncpa [#allocation4], 1
    %s802 = scalar_lea.sflag [#allocation4], 1
    %803 = vsyncpa %s802, 1

</llo_original>
